<compile_context>
chip_gen: v6e
topology: v6e:2x2x1
jax: 0.10.0
libtpu: 0.0.40
codegen_flags: <defaults>
</compile_context>

<pallas_src>
import jax
import jax.numpy as jnp
from jax.experimental import pallas as pl
from jax.experimental.pallas import tpu as pltpu


# --------------------------------------------------------------------------
# Kernel 1: FC -> (scale_p1, shift), run once, tiny.
# --------------------------------------------------------------------------
def _fc_style_kernel(latent_ref, w_ref, b_ref, scale_ref, shift_ref):
    """latent (B,L), w (L,2C), b (1,2C) -> scale_p1 (B,C), shift (B,C), f32.

    leaky_relu(0.2) applied in-kernel; the +1.0 for the scale half is folded
    here so the streaming kernel consumes ready-to-use per-row params.
    """
    s = jnp.dot(latent_ref[...], w_ref[...],
                preferred_element_type=jnp.float32) + b_ref[...]
    s = jnp.where(s >= 0.0, s, 0.2 * s)           # leaky_relu(0.2)
    c = scale_ref.shape[1]
    scale_ref[...] = s[:, :c] + 1.0
    shift_ref[...] = s[:, c:]


def _fc_style(latent, w_eff, b_eff, channels):
    b = latent.shape[0]
    return pl.pallas_call(
        _fc_style_kernel,
        out_shape=(jax.ShapeDtypeStruct((b, channels), jnp.float32),
                   jax.ShapeDtypeStruct((b, channels), jnp.float32)),
    )(latent, w_eff, b_eff)


# --------------------------------------------------------------------------
# Kernel 2: streaming modulation  out = x * scale_p1 + shift
# --------------------------------------------------------------------------
def _modulate_kernel(scale_ref, shift_ref, x_ref, o_ref):
    """scale/shift: (TR, 1) f32 per-row, x/o: (TR, THW) in x's dtype."""
    x = x_ref[...]
    s = scale_ref[...].astype(x.dtype)            # broadcast along lane axis
    t = shift_ref[...].astype(x.dtype)
    o_ref[...] = x * s + t


# --------------------------------------------------------------------------
# Tiling / VMEM configuration helpers.
# --------------------------------------------------------------------------
def _round_down(n, q):
    return max((n // q) * q, q)


def _vmem_config():
    """Generation-aware (vmem_limit_bytes, per-tile byte target)."""
    cap = None
    try:
        info = pltpu.get_tpu_info()
        cap = getattr(info, "vmem_capacity_bytes", None)
    except Exception:
        cap = None
    if cap is None:
        cap = 64 * 1024 * 1024                      # conservative (v7x-sized)
    if cap >= 128 * 1024 * 1024:                    # v5e / v6e: 128 MiB VMEM
        return 96 * 1024 * 1024, 8 * 1024 * 1024
    # v7x: 64 MiB per TensorCore -> keep double-buffered in+out under ~48 MiB.
    return 48 * 1024 * 1024, 4 * 1024 * 1024


def _choose_tiles(rows, cols, itemsize, tile_bytes_target, row_quantum):
    """Pick (tr, thw) so one x tile is ~tile_bytes_target bytes.

    thw is a multiple of 128 (or full cols); tr is a multiple of the dtype-aware
    row quantum (or full rows).
    """
    if cols <= 128:
        thw = cols                                  # full-dim exemption
    else:
        max_thw = max(tile_bytes_target // (row_quantum * itemsize), 128)
        thw = _round_down(min(cols, max_thw), 128)
    if rows <= row_quantum:
        tr = rows                                   # full-dim exemption
    else:
        max_tr = max(tile_bytes_target // (thw * itemsize), row_quantum)
        tr = _round_down(min(rows, max_tr), row_quantum)
    return tr, thw


# --------------------------------------------------------------------------
# Public wrapper.
# --------------------------------------------------------------------------
def apply_style(x, latent, weight, bias, w_lrmul, b_lrmul, *, donate_x=False):
    """x: (B, C, H, W)  latent: (B, L)  weight: (2C, L)  bias: (2C,)

    donate_x=True adds input_output_aliases to reuse x's HBM buffer for the
    output (only when the caller no longer needs x).
    """
    B, C, H, W = x.shape
    HW = H * W
    BC = B * C

    # ---- parameter glue (outside the hot path) ----
    w_eff = (weight.astype(jnp.float32) * w_lrmul).T                 # (L, 2C)
    b_eff = (bias.astype(jnp.float32) * b_lrmul).reshape(1, 2 * C)

    # ---- one-shot FC kernel: per-channel scale(+1) / shift, f32 ----
    scale_p1, shift = _fc_style(latent.astype(jnp.float32), w_eff, b_eff, C)

    # ---- lane-density guard: pick a lane-dense slab factorization ----
    if HW % 128 == 0 or HW <= 128:
        rows, cols = BC, HW
        x2 = x.reshape(rows, cols)
        sc = scale_p1.reshape(rows, 1)
        sh = shift.reshape(rows, 1)
    elif W % 128 == 0:
        # HW is ragged in lanes but W is not: stream (B*C*H, W) instead.
        rows, cols = BC * H, W
        x2 = x.reshape(rows, cols)
        sc = jnp.broadcast_to(scale_p1[:, :, None], (B, C, H)).reshape(rows, 1)
        sh = jnp.broadcast_to(shift[:, :, None], (B, C, H)).reshape(rows, 1)
    else:
        # Neither HW nor W is a multiple of 128: fall back to (B*C, HW) and
        # accept masked lane-edge stores on the last hw tile.
        rows, cols = BC, HW
        x2 = x.reshape(rows, cols)
        sc = scale_p1.reshape(rows, 1)
        sh = shift.reshape(rows, 1)

    # ---- generation-aware, bytes-based tile sizing ----
    itemsize = jnp.dtype(x.dtype).itemsize
    row_quantum = max(8, 32 // itemsize)            # 8 f32 / 16 bf16 / 32 int8
    vmem_limit, tile_bytes = _vmem_config()
    tr, thw = _choose_tiles(rows, cols, itemsize, tile_bytes, row_quantum)

    # ---- megacore: guarantee >= 2 blocks total when possible (v7x 2 TCs) ----
    if pl.cdiv(rows, tr) * pl.cdiv(cols, thw) < 2:
        if thw == cols and cols >= 256:
            thw = _round_down(cols // 2, 128)
        elif tr == rows and rows > row_quantum:
            tr = _round_down(pl.cdiv(rows, 2), row_quantum)

    # Grid: rows outer, hw INNERMOST (fastest). scale/shift index maps return
    # (r, 0) so their (tr, 1) blocks stay VMEM-resident across all hw steps.
    grid = (pl.cdiv(rows, tr), pl.cdiv(cols, thw))

    extra = {}
    if donate_x:
        extra["input_output_aliases"] = {2: 0}      # x2 -> out2

    # TODO(synk): optionally sweep pipeline_mode=pl.Buffered(3) on the x spec
    # for v7x if exposed DMA jitter shows up in traces (VMEM budget permitting).
    out2 = pl.pallas_call(
        _modulate_kernel,
        out_shape=jax.ShapeDtypeStruct((rows, cols), x.dtype),
        grid_spec=pltpu.PrefetchScalarGridSpec(
            num_scalar_prefetch=0,
            grid=grid,
            in_specs=[
                pl.BlockSpec((tr, 1), lambda r, h: (r, 0)),       # scale + 1
                pl.BlockSpec((tr, 1), lambda r, h: (r, 0)),       # shift
                pl.BlockSpec((tr, thw), lambda r, h: (r, h)),     # x tile
            ],
            out_specs=pl.BlockSpec((tr, thw), lambda r, h: (r, h)),
        ),
        compiler_params=pltpu.CompilerParams(
            dimension_semantics=("parallel", "parallel"),
            vmem_limit_bytes=vmem_limit,
        ),
        **extra,
    )(sc, sh, x2)

    return out2.reshape(B, C, H, W)


# --------------------------------------------------------------------------
# Pure-JAX reference mirroring the PyTorch forward.
# --------------------------------------------------------------------------
def reference_apply_style(x, latent, weight, bias, w_lrmul, b_lrmul):
    style = latent @ (weight * w_lrmul).T + bias * b_lrmul
    style = jnp.where(style >= 0.0, style, 0.2 * style)              # leaky_relu(0.2)
    B, C = x.shape[0], x.shape[1]
    style = style.reshape(B, 2, C, 1, 1)
    return x * (style[:, 0] + 1.0) + style[:, 1]


if __name__ == "__main__":
    # Small shapes consistent with the module: x (B, C, H, W), latent (B, latent_size)
    B, C, H, W = 2, 4, 16, 16
    latent_size = 8

    key = jax.random.PRNGKey(0)
    kx, kl, kw = jax.random.split(key, 3)

    x = jax.random.normal(kx, (B, C, H, W), dtype=jnp.float32)
    latent = jax.random.normal(kl, (B, latent_size), dtype=jnp.float32)

    # FC(latent_size, 2*C, gain=1.0, use_wscale=True) deterministic init:
    #   he_std = gain * in**-0.5 ; use_wscale -> init_std = 1/lrmul, w_lrmul = he_std*lrmul
    gain, lrmul = 1.0, 1.0
    he_std = gain * latent_size ** (-0.5)
    init_std = 1.0 / lrmul
    w_lrmul = he_std * lrmul
    b_lrmul = lrmul
    weight = jax.random.normal(kw, (2 * C, latent_size), dtype=jnp.float32) * init_std
    bias = jnp.zeros((2 * C,), dtype=jnp.float32)

    out = apply_style(x, latent, weight, bias, w_lrmul, b_lrmul)
    out = jax.block_until_ready(out)

    ref = reference_apply_style(x, latent, weight, bias, w_lrmul, b_lrmul)
    assert out.shape == (B, C, H, W)
    assert jnp.allclose(out, ref, atol=1e-5, rtol=1e-5), "mismatch vs reference"

    print("KERNEL_OK")
</pallas_src>

<mosaic_0001>
module attributes {stable_mosaic.version = 11 : i64} {
  func.func @_fc_style_kernel(%arg0: memref<2x8xf32, #tpu.memory_space<vmem>>, %arg1: memref<8x8xf32, #tpu.memory_space<vmem>>, %arg2: memref<1x8xf32, #tpu.memory_space<vmem>>, %arg3: memref<2x4xf32, #tpu.memory_space<vmem>>, %arg4: memref<2x4xf32, #tpu.memory_space<vmem>>) attributes {dimension_semantics = [], scalar_prefetch = 0 : i64, scratch_operands = 0 : i64, tpu.core_type = #tpu.core_type<tc>} {
    %c0 = arith.constant 0 : index
    %c0_0 = arith.constant 0 : index
    %0 = vector.load %arg0[%c0, %c0_0] : memref<2x8xf32, #tpu.memory_space<vmem>>, vector<2x8xf32>
    %c0_1 = arith.constant 0 : index
    %c0_2 = arith.constant 0 : index
    %1 = vector.load %arg1[%c0_1, %c0_2] : memref<8x8xf32, #tpu.memory_space<vmem>>, vector<8x8xf32>
    %cst = arith.constant dense<0.000000e+00> : vector<2x8xf32>
    %2 = tpu.matmul %0, %1, %cst {dimension_numbers = #tpu.dot_dimension_numbers<[1], [0], [0], [1], [0, 0, 1, 1], [], []>} : vector<2x8xf32>, vector<8x8xf32>, vector<2x8xf32> -> vector<2x8xf32>
    %c0_3 = arith.constant 0 : index
    %c0_4 = arith.constant 0 : index
    %3 = vector.load %arg2[%c0_3, %c0_4] : memref<1x8xf32, #tpu.memory_space<vmem>>, vector<1x8xf32>
    %4 = vector.broadcast %3 : vector<1x8xf32> to vector<2x8xf32>
    %5 = arith.addf %2, %4 : vector<2x8xf32>
    %cst_5 = arith.constant 0.000000e+00 : f32
    %6 = vector.broadcast %cst_5 : f32 to vector<2x8xf32>
    %7 = arith.cmpf oge, %5, %6 : vector<2x8xf32>
    %cst_6 = arith.constant 2.000000e-01 : f32
    %8 = vector.broadcast %cst_6 : f32 to vector<2x8xf32>
    %9 = arith.mulf %8, %5 : vector<2x8xf32>
    %10 = arith.select %7, %5, %9 : vector<2x8xi1>, vector<2x8xf32>
    %11 = vector.extract_strided_slice %10 {offsets = [0, 0], sizes = [2, 4], strides = [1, 1]} : vector<2x8xf32> to vector<2x4xf32>
    %cst_7 = arith.constant 1.000000e+00 : f32
    %12 = vector.broadcast %cst_7 : f32 to vector<2x4xf32>
    %13 = arith.addf %11, %12 : vector<2x4xf32>
    %c0_8 = arith.constant 0 : index
    %c0_9 = arith.constant 0 : index
    %14 = vector.load %arg3[%c0_8, %c0_9] : memref<2x4xf32, #tpu.memory_space<vmem>>, vector<2x4xf32>
    tpu.vector_store %arg3[%c0_8, %c0_9], %13 {strides = array<i32>} : memref<2x4xf32, #tpu.memory_space<vmem>>, vector<2x4xf32>,
    %15 = vector.extract_strided_slice %10 {offsets = [0, 4], sizes = [2, 4], strides = [1, 1]} : vector<2x8xf32> to vector<2x4xf32>
    %c0_10 = arith.constant 0 : index
    %c0_11 = arith.constant 0 : index
    %16 = vector.load %arg4[%c0_10, %c0_11] : memref<2x4xf32, #tpu.memory_space<vmem>>, vector<2x4xf32>
    tpu.vector_store %arg4[%c0_10, %c0_11], %15 {strides = array<i32>} : memref<2x4xf32, #tpu.memory_space<vmem>>, vector<2x4xf32>,
    return
  }
}

</mosaic_0001>

<llo_original>
// kernel: tpu_custom_call.1
$region0: #{tpu_custom_call.1}
  #allocation0 [shape = 'u32[]', space=smem, size = 0x4, offset = 0x4, fixed_abs, tag = 'smem constant byte address 0x4 - core index']
  #allocation1 [shape = 'u32[144,128]{1,0:T(1,128)}', space=vmem, size = 0x12000, scoped, tag = 'internal scratch']
  %s0 = inlined_call_operand.hbm [shape: f32[2,8], index: 0, kind: input, shape index: {}]
  %s1 = inlined_call_operand.hbm [shape: f32[8,8], index: 1, kind: input, shape index: {}]
  %s2 = inlined_call_operand.vmem [shape: f32[1,8], index: 2, kind: input, shape index: {}]
  %s3 = inlined_call_operand.hbm [shape: f32[2,4], index: 3, kind: output, shape index: {0}]
  %s4 = inlined_call_operand.hbm [shape: f32[2,4], index: 4, kind: output, shape index: {1}]
  %5 = xla_tuple %s3, %s4
  %s6 = sld [smem:[#allocation0]]
  $region38: #{tpu_custom_call.1} parent=0
    _
  %s8 = ssub.s32 1, %s6
  %s9 = scalar_select 0, %s8, %s6
  $region1: #{tpu_custom_call.1} parent=0
    #allocation2 [shape = 'u8[1024]{0}', space=vmem, size = 0x400, scoped, tag = 'input window, operand 0, single buffered']
    #allocation3 [shape = 's32[1]{0}', space=sflag, size = 0x4, scoped, tag = 'scoped memory for tpu_custom_call.1']
    #allocation4 [shape = 's32[1]{0}', space=sflag, size = 0x4, scoped, tag = 'scoped memory for tpu_custom_call.1']
    #allocation5 [shape = 'u8[4096]{0}', space=vmem, size = 0x1000, scoped, tag = 'input window, operand 1, single buffered']
    #allocation6 [shape = 's32[1]{0}', space=sflag, size = 0x4, scoped, tag = 'scoped memory for tpu_custom_call.1']
    #allocation7 [shape = 'u8[1024]{0}', space=vmem, size = 0x400, scoped, tag = 'output window, operand 0, single buffered']
    #allocation8 [shape = 'u8[1024]{0}', space=vmem, size = 0x400, scoped, tag = 'output window, operand 1, single buffered']
    #allocation9 [shape = 's32[1]{0}', space=sflag, size = 0x4, scoped, tag = 'scoped memory for tpu_custom_call.1']
    %10 = vsyncpa [#allocation3], 0
    %11 = vsyncpa [#allocation6], 0
    %12 = vsyncpa [#allocation4], 0
    %13 = vsyncpa [#allocation9], 0
    // Predicated region
    $region2: #{tpu_custom_call.1} parent=1 // pred_check
      _
    $region3: #{tpu_custom_call.1} parent=1 // pred_check_branch
      %15 = sbr.rel (0) target = $region5
    $region4: #{tpu_custom_call.1} parent=1 // pred_region
      %s17 = ssub.s32 32, 32
      %18 = vsyncadd [#allocation3], %s17
      %s20 = sshll.u32 [#allocation2], 4
      %s21 = int_to_ptr.vmem [resolvable:$true] %s20
      %23 = dma.hbm_to_vmem [thread:$0]  %s0, 32, %s21, [#allocation3]
    $region5: #{tpu_custom_call.1} parent=1 // pred_fallthru
      _
    // Predicated region
    $region6: #{tpu_custom_call.1} parent=1 // pred_check
      _
    $region7: #{tpu_custom_call.1} parent=1 // pred_check_branch
      %25 = sbr.rel (0) target = $region9
    $region8: #{tpu_custom_call.1} parent=1 // pred_region
      %s27 = ssub.s32 128, 128
      %28 = vsyncadd [#allocation6], %s27
      %s30 = sshll.u32 [#allocation5], 4
      %s31 = int_to_ptr.vmem [resolvable:$true] %s30
      %33 = dma.hbm_to_vmem [thread:$0]  %s1, 128, %s31, [#allocation6]
    $region9: #{tpu_custom_call.1} parent=1 // pred_fallthru
      _
    // Predicated region
    $region10: #{tpu_custom_call.1} parent=1 // pred_check
      _
    $region11: #{tpu_custom_call.1} parent=1 // pred_check_branch
      %35 = sbr.rel (0) target = $region13
    $region12: #{tpu_custom_call.1} parent=1 // pred_region
      _
    $region13: #{tpu_custom_call.1} parent=1 // pred_fallthru
      _
    // Predicated region
    $region14: #{tpu_custom_call.1} parent=1 // pred_check
      _
    $region15: #{tpu_custom_call.1} parent=1 // pred_check_branch
      %37 = sbr.rel (0) target = $region17
    $region16: #{tpu_custom_call.1} parent=1 // pred_region
      %38 = dma.done [#allocation3], 32
    $region17: #{tpu_custom_call.1} parent=1 // pred_fallthru
      _
    // Predicated region
    $region18: #{tpu_custom_call.1} parent=1 // pred_check
      _
    $region19: #{tpu_custom_call.1} parent=1 // pred_check_branch
      %40 = sbr.rel (0) target = $region21
    $region20: #{tpu_custom_call.1} parent=1 // pred_region
      %41 = dma.done [#allocation6], 128
    $region21: #{tpu_custom_call.1} parent=1 // pred_fallthru
      _
    %v42 = vld [vmem:[#allocation2] sm:$0x3]
    %v43 = vld [vmem:[#allocation5] sm:$0xff]
    %v44 = vld [vmem:[%s2] sm:$0x1]
    %v46 = vlaneseq
    %v47 = vshrl.u32 %v46, 7
    %v48 = vsub.s32 0, %v47
    %v49 = vrot.slane %v44, %v48
    %vm51 = vcmask 64512
    %v53 = vsel %vm51, %v42, 0
    %55 = vmatprep.subr.mxu0 0.0
    %56 = vmatpush1.msra.mxu0 0.0
    %57 = vmatprep.subr.mxu0 0.0
    %58 = vmatpush1.msra.mxu0 0.0
    %59 = vmatprep.subr.mxu0 0.0
    %60 = vmatpush1.msra.mxu0 0.0
    %61 = vmatprep.subr.mxu0 0.0
    %62 = vmatpush1.msra.mxu0 0.0
    %63 = vmatprep.subr.mxu0 0.0
    %64 = vmatpush1.msra.mxu0 0.0
    %65 = vmatprep.subr.mxu0 0.0
    %66 = vmatpush1.msra.mxu0 0.0
    %67 = vmatprep.subr.mxu0 0.0
    %68 = vmatpush1.msra.mxu0 0.0
    %69 = vmatprep.subr.mxu0 0.0
    %70 = vmatpush1.msra.mxu0 0.0
    %71 = vmatprep.subr.mxu0 0.0
    %72 = vmatpush1.msra.mxu0 0.0
    %73 = vmatprep.subr.mxu0 0.0
    %74 = vmatpush1.msra.mxu0 0.0
    %75 = vmatprep.subr.mxu0 0.0
    %76 = vmatpush1.msra.mxu0 0.0
    %77 = vmatprep.subr.mxu0 0.0
    %78 = vmatpush1.msra.mxu0 0.0
    %79 = vmatprep.subr.mxu0 0.0
    %80 = vmatpush1.msra.mxu0 0.0
    %81 = vmatprep.subr.mxu0 0.0
    %82 = vmatpush1.msra.mxu0 0.0
    %83 = vmatprep.subr.mxu0 0.0
    %84 = vmatpush1.msra.mxu0 0.0
    %85 = vmatprep.subr.mxu0 0.0
    %86 = vmatpush1.msra.mxu0 %v43
    %87 = vmatprep.subr.mxu0 0.0
    %88 = vmatpush2.msra.mxu0 0.0
    %89 = vmatprep.subr.mxu0 0.0
    %90 = vmatpush2.msra.mxu0 0.0
    %91 = vmatprep.subr.mxu0 0.0
    %92 = vmatpush2.msra.mxu0 0.0
    %93 = vmatprep.subr.mxu0 0.0
    %94 = vmatpush2.msra.mxu0 0.0
    %95 = vmatprep.subr.mxu0 0.0
    %96 = vmatpush2.msra.mxu0 0.0
    %97 = vmatprep.subr.mxu0 0.0
    %98 = vmatpush2.msra.mxu0 0.0
    %99 = vmatprep.subr.mxu0 0.0
    %100 = vmatpush2.msra.mxu0 0.0
    %101 = vmatprep.subr.mxu0 0.0
    %102 = vmatpush2.msra.mxu0 0.0
    %103 = vmatprep.subr.mxu0 0.0
    %104 = vmatpush2.msra.mxu0 0.0
    %105 = vmatprep.subr.mxu0 0.0
    %106 = vmatpush2.msra.mxu0 0.0
    %107 = vmatprep.subr.mxu0 0.0
    %108 = vmatpush2.msra.mxu0 0.0
    %109 = vmatprep.subr.mxu0 0.0
    %110 = vmatpush2.msra.mxu0 0.0
    %111 = vmatprep.subr.mxu0 0.0
    %112 = vmatpush2.msra.mxu0 0.0
    %113 = vmatprep.subr.mxu0 0.0
    %114 = vmatpush2.msra.mxu0 0.0
    %115 = vmatprep.subr.mxu0 0.0
    %116 = vmatpush2.msra.mxu0 0.0
    %117 = vmatprep.subr.mxu0 0.0
    %118 = vmatpush2.msra.mxu0 0.0
    %119 = vmatprep.mubr.f32.mxu0 0.0
    %120 = vmatmul.mubr.f32.gmra.mxu0 %v53
    %v121 = vpop.f32.mrf.mxu0
    %v122 = vadd.f32 %v49, %v121
    %v123 = vpop.f32.mrf.mxu0
    %124 = vdwg.mxu0
    %vm125 = vcmp.ge.f32.partialorder %v122, 0.0
    %v126 = vmul.f32 %v122, 0.2
    %v127 = vsel %vm125, %v122, %v126
    %v128 = vadd.f32 %v127, 1.0
    %vm129 = vcmask 25600
    %130 = vst.msk [vmem:[#allocation7] sm:$0x3] %vm129, %v128
    %132 = vrot.lane.b32.xlu0 %v127, 124
    %v133 = vpop.permute.xlu0 %132
    %135 = vst.msk [vmem:[#allocation8] sm:$0x3] %vm129, %v133
    // Predicated region
    $region22: #{tpu_custom_call.1} parent=1 // pred_check
      _
    $region23: #{tpu_custom_call.1} parent=1 // pred_check_branch
      %137 = sbr.rel (0) target = $region25
    $region24: #{tpu_custom_call.1} parent=1 // pred_region
      %s139 = ssub.s32 32, 32
      %140 = vsyncadd [#allocation4], %s139
      %s142 = sshll.u32 [#allocation7], 4
      %s143 = int_to_ptr.vmem [resolvable:$true] %s142
      %145 = dma.vmem_to_hbm [thread:$0]  %s143, 32, %s3, [#allocation4]
    $region25: #{tpu_custom_call.1} parent=1 // pred_fallthru
      _
    // Predicated region
    $region26: #{tpu_custom_call.1} parent=1 // pred_check
      _
    $region27: #{tpu_custom_call.1} parent=1 // pred_check_branch
      %147 = sbr.rel (0) target = $region29
    $region28: #{tpu_custom_call.1} parent=1 // pred_region
      %s149 = ssub.s32 32, 32
      %150 = vsyncadd [#allocation9], %s149
      %s152 = sshll.u32 [#allocation8], 4
      %s153 = int_to_ptr.vmem [resolvable:$true] %s152
      %155 = dma.vmem_to_hbm [thread:$0]  %s153, 32, %s4, [#allocation9]
    $region29: #{tpu_custom_call.1} parent=1 // pred_fallthru
      _
    // Predicated region
    $region30: #{tpu_custom_call.1} parent=1 // pred_check
      _
    $region31: #{tpu_custom_call.1} parent=1 // pred_check_branch
      %157 = sbr.rel (0) target = $region33
    $region32: #{tpu_custom_call.1} parent=1 // pred_region
      %158 = dma.done [#allocation4], 32
    $region33: #{tpu_custom_call.1} parent=1 // pred_fallthru
      _
    // Predicated region
    $region34: #{tpu_custom_call.1} parent=1 // pred_check
      _
    $region35: #{tpu_custom_call.1} parent=1 // pred_check_branch
      %160 = sbr.rel (0) target = $region37
    $region36: #{tpu_custom_call.1} parent=1 // pred_region
      %161 = dma.done [#allocation9], 32
    $region37: #{tpu_custom_call.1} parent=1 // pred_fallthru
      _
    %162 = vsyncpa [#allocation3], 1
    %163 = vsyncpa [#allocation6], 1
    %164 = vsyncpa [#allocation4], 1
    %165 = vsyncpa [#allocation9], 1

</llo_original>
